<compile_context>
chip_gen: v5e
topology: v5e:2x2
jax: 0.10.0
libtpu: 0.0.40
codegen_flags: <defaults>
</compile_context>

<pallas_src>
from functools import partial

import numpy as np

import jax
import jax.numpy as jnp
from jax import lax
from jax.experimental import pallas as pl
from jax.experimental.pallas import tpu as pltpu


def _round_up(x, m):
    return ((x + m - 1) // m) * m


def _device_kind_lower():
    try:
        return jax.devices()[0].device_kind.lower()
    except Exception:
        return ""


def _make_charcnn_kernel(num_positions, k_max):
    """Build the fused kernel for static conv-position count L and max tap count K."""
    L = int(num_positions)
    K = int(k_max)

    def kernel(ids_ref, len_ref, tab_ref, kcol_ref, b_ref, out_ref):
        # ids_ref:  (TB, Tp)       int32  padded char ids (padding id -> zero table row)
        # len_ref:  (TB, 1)        int32  per-row sequence length
        # tab_ref:  (V_pad, K*Fp)  bf16   fused emb x conv table (tap-major columns)
        # kcol_ref: (1, Fp)        int32  kernel size of each output column
        # b_ref:    (1, Fp)        f32    fused conv bias
        # out_ref:  (TB, Fp)       f32    max-over-time features
        TB, Tp = ids_ref.shape
        Vp, KFp = tab_ref.shape
        Fp = out_ref.shape[1]

        # 1) One-hot (directly bf16) x fused table: a single MXU matmul with
        #    contraction depth V_pad (>=128) and N = K*Fp lane-dense columns.
        ids = ids_ref[...]                                              # (TB, Tp)
        iota_v = lax.broadcasted_iota(jnp.int32, (TB, Tp, Vp), 2)
        onehot = (iota_v == ids[:, :, None]).astype(jnp.bfloat16)       # (TB, Tp, Vp)
        onehot = onehot.reshape(TB * Tp, Vp)                            # Tp % 16 == 0
        acc = lax.dot_general(onehot, tab_ref[...],
                              (((1,), (0,)), ((), ())),
                              preferred_element_type=jnp.float32)       # (TB*Tp, K*Fp) f32
        acc = acc.reshape(TB, Tp, KFp)

        # 2) Valid conv as K shifted adds of lane-dense (TB, L, Fp) f32 slabs
        #    (tap columns for kernels shorter than K are exact zeros).
        conv = acc[:, 0:L, 0:Fp]
        for t in range(1, K):
            conv = conv + acc[:, t:t + L, t * Fp:(t + 1) * Fp]

        # 3) Length mask with a large-negative fill, max over time, THEN bias
        #    + ReLU on the reduced (TB, Fp) tile. Bias-add and ReLU are
        #    monotone, and thr >= 1 guarantees one unmasked position, so this
        #    is exactly the reference's relu(conv+b) -> -inf mask -> max.
        thr = jnp.maximum(len_ref[...] - kcol_ref[...] + 1, 1)          # (TB, Fp) int32
        pos = lax.broadcasted_iota(jnp.int32, (TB, L, Fp), 1)
        conv = jnp.where(pos < thr[:, None, :], conv, jnp.float32(-3e38))
        maxed = jnp.max(conv, axis=1)                                   # (TB, Fp)
        out_ref[...] = jnp.maximum(maxed + b_ref[...], 0.0)

    return kernel


@partial(jax.jit,
         static_argnames=("batch_tile", "num_positions", "k_max", "vmem_limit"))
def _charcnn_forward(ids, lens, table, kcol, bias, *,
                     batch_tile, num_positions, k_max, vmem_limit):
    B_pad, Tp = ids.shape
    Vp, KFp = table.shape
    Fp = bias.shape[1]
    grid = (B_pad // batch_tile,)
    kernel = _make_charcnn_kernel(num_positions, k_max)
    return pl.pallas_call(
        kernel,
        out_shape=jax.ShapeDtypeStruct((B_pad, Fp), jnp.float32),
        grid_spec=pltpu.PrefetchScalarGridSpec(
            num_scalar_prefetch=0,
            grid=grid,
            in_specs=[
                pl.BlockSpec((batch_tile, Tp), lambda i: (i, 0)),  # char ids (tiled on B)
                pl.BlockSpec((batch_tile, 1), lambda i: (i, 0)),   # per-row lengths
                pl.BlockSpec((Vp, KFp), lambda i: (0, 0)),         # fused emb x conv table
                pl.BlockSpec((1, Fp), lambda i: (0, 0)),           # kernel size per column
                pl.BlockSpec((1, Fp), lambda i: (0, 0)),           # fused bias
            ],
            out_specs=pl.BlockSpec((batch_tile, Fp), lambda i: (i, 0)),
        ),
        compiler_params=pltpu.CompilerParams(
            dimension_semantics=("parallel",),   # shard B grid over TCs (v7x)
            vmem_limit_bytes=vmem_limit,
        ),
    )(ids, lens, table, kcol, bias)


class CharCNNPallas:
    """JAX/Pallas equivalent of CharCNN (inference; dropout acts as identity)."""

    def __init__(self, vocab_size, emb_dim, feature_size, kernel_sizes,
                 bias=True, seed=0, batch_tile=128):
        if isinstance(kernel_sizes, int):
            kernel_sizes = [kernel_sizes]
        self.kernel_sizes = list(kernel_sizes)
        self.feature_size = feature_size
        self.emb_dim = emb_dim
        self.k_max = max(self.kernel_sizes)
        self.num_kernels = len(self.kernel_sizes)
        self.out_size = feature_size * self.num_kernels
        # nn.Embedding(size+1, dim, padding_idx=-1): padding_idx resolves to
        # the last row (index == vocab_size), whose embedding row is zero.
        self.padding_idx = vocab_size
        self.batch_tile = max(8, _round_up(int(batch_tile), 8))

        # Per-generation tuning: contraction depth and VMEM budget.
        kind = _device_kind_lower()
        is_v7 = ("v7" in kind) or ("7x" in kind)
        is_v6 = "v6" in kind
        is_v5 = "v5" in kind
        if is_v7:
            depth, self.vmem_limit = 256, 48 * 1024 * 1024   # 64 MiB/TC physical
        elif is_v6:
            depth, self.vmem_limit = 256, 64 * 1024 * 1024
        elif is_v5:
            depth, self.vmem_limit = 128, 64 * 1024 * 1024   # 128-deep MXU
        else:                                                # unknown: safe defaults
            depth, self.vmem_limit = 128, 48 * 1024 * 1024
        self._prefer_two_steps = is_v7

        key = jax.random.PRNGKey(seed)
        key, k_emb = jax.random.split(key)
        emb = jax.random.normal(k_emb, (vocab_size + 1, emb_dim), jnp.float32)
        emb = emb.at[self.padding_idx].set(0.0)
        emb_np = np.asarray(emb, np.float32)

        # PyTorch-layout conv params (kept in f32 for the reference path).
        self._weights_fdk = []
        self._biases_f = []
        for k in self.kernel_sizes:
            key, kw, kb = jax.random.split(key, 3)
            bound = 1.0 / float(np.sqrt(emb_dim * k))
            w = jax.random.uniform(kw, (feature_size, emb_dim, k),
                                   jnp.float32, -bound, bound)          # (F, D, K)
            b = (jax.random.uniform(kb, (feature_size,), jnp.float32, -bound, bound)
                 if bias else jnp.zeros((feature_size,), jnp.float32))
            self._weights_fdk.append(np.asarray(w, np.float32))
            self._biases_f.append(np.asarray(b, np.float32))

        # Fused table: fold embedding into the conv weights host-side.
        #   T[v, t*F_pad + j*F + f] = sum_d emb[v, d] * w_j[f, d, t]   (t < k_j, else 0)
        # Padding row of the embedding is exactly zero -> table row is exactly zero,
        # as are the vocab-padding rows up to V_pad.
        self.f_pad = _round_up(self.out_size, 128)
        self.v_pad = _round_up(vocab_size + 1, depth)
        KFp = self.k_max * self.f_pad
        V1 = vocab_size + 1
        table = np.zeros((self.v_pad, KFp), np.float32)
        bias_fused = np.zeros((1, self.f_pad), np.float32)
        kcol = np.ones((1, self.f_pad), np.int32)
        for j, (k, w, b) in enumerate(zip(self.kernel_sizes,
                                          self._weights_fdk, self._biases_f)):
            c0 = j * feature_size
            for t in range(k):
                contrib = emb_np @ w[:, :, t].T                          # (V1, F)
                col = t * self.f_pad + c0
                table[:V1, col:col + feature_size] = contrib
            bias_fused[0, c0:c0 + feature_size] = b
            kcol[0, c0:c0 + feature_size] = k

        self.table_bf16 = jnp.asarray(table, jnp.bfloat16)   # (V_pad, Kmax*F_pad)
        self._table_f32 = np.asarray(
            jnp.asarray(table, jnp.bfloat16).astype(jnp.float32))  # bf16-rounded, for ref
        self.bias_fused = jnp.asarray(bias_fused, jnp.float32)     # (1, F_pad)
        self.kcol = jnp.asarray(kcol, jnp.int32)                   # (1, F_pad)

    def _pick_batch_tile(self, B, Tp, L):
        # Cap the batch tile so per-step intermediates fit the VMEM budget.
        per_row = (Tp * self.v_pad * 6                      # one-hot bf16 + iota i32
                   + Tp * self.k_max * self.f_pad * 4       # matmul accumulator f32
                   + L * self.f_pad * 8)                    # conv + masked copy f32
        budget = self.vmem_limit // 2
        tb_cap = max(8, (budget // max(per_row, 1)) // 8 * 8)
        TB = min(self.batch_tile, tb_cap, _round_up(max(B, 1), 8))
        TB = max(8, (TB // 8) * 8)
        B_pad = _round_up(max(B, 1), TB)
        # On v7x, prefer >= 2 grid steps so both TensorCores get work.
        if self._prefer_two_steps and B_pad // TB < 2 and TB >= 16:
            TB = max(8, _round_up(TB // 2, 8))
            B_pad = _round_up(max(B, 1), TB)
        return TB, B_pad

    def __call__(self, char_ids):
        # char_ids: sequence of 1-D int arrays (ragged batch).  Host-side glue
        # (pad_sequence equivalent, bucketing) is NumPy; one fused pallas_call.
        # TODO(synk): dropout is identity here (p=0.0 / eval mode), not implemented.
        seqs = [np.asarray(ids, np.int32) for ids in char_ids]
        B = len(seqs)
        lengths = np.array([s.shape[0] for s in seqs], np.int32) if B else np.zeros((0,), np.int32)
        max_len = int(lengths.max()) if B else 1

        # Bucketed time dims -> fewer recompiles + layout-preserving reshapes.
        L = _round_up(max(max_len, 1), 16)                 # conv output positions
        Tp = _round_up(L + self.k_max - 1, 16)             # padded input length

        TB, B_pad = self._pick_batch_tile(B, Tp, L)

        padded = np.full((B_pad, Tp), self.padding_idx, np.int32)
        for i, s in enumerate(seqs):
            padded[i, :s.shape[0]] = s
        lens = np.zeros((B_pad, 1), np.int32)
        if B:
            lens[:B, 0] = lengths

        out = _charcnn_forward(jnp.asarray(padded), jnp.asarray(lens),
                               self.table_bf16, self.kcol, self.bias_fused,
                               batch_tile=TB, num_positions=L, k_max=self.k_max,
                               vmem_limit=self.vmem_limit)
        return out[:B, :self.out_size]

    # --- pure NumPy reference in PyTorch op order (same bf16-rounded table) --
    def reference_forward(self, char_ids):
        seqs = [np.asarray(ids, np.int64) for ids in char_ids]
        B = len(seqs)
        lengths = np.array([s.shape[0] for s in seqs], np.int64)
        T = max(int(lengths.max()), self.k_max)
        padded = np.full((B, T), self.padding_idx, np.int64)
        for i, s in enumerate(seqs):
            padded[i, :s.shape[0]] = s
        tab = self._table_f32.reshape(self.v_pad, self.k_max, self.f_pad)
        contrib = tab[padded]                                # (B, T, Kmax, F_pad)
        outs = []
        for j, k in enumerate(self.kernel_sizes):
            Lk = T - k + 1
            c0 = j * self.feature_size
            conv = np.zeros((B, Lk, self.feature_size), np.float32)
            for t in range(k):
                conv += contrib[:, t:t + Lk, t, c0:c0 + self.feature_size]
            conv += self._biases_f[j][None, None, :]
            h = np.maximum(conv, 0.0)                        # relu(conv + b)
            osz = np.maximum(lengths - k + 1, 1)
            mask = np.arange(Lk)[None, :] >= osz[:, None]
            h = np.where(mask[:, :, None], -np.inf, h)       # -inf fill
            outs.append(h.max(axis=1))                       # max over time
        return np.concatenate(outs, axis=1).astype(np.float32)


if __name__ == "__main__":
    key = jax.random.PRNGKey(0)
    vocab_size, emb_dim, feature_size = 20, 8, 16
    kernel_sizes = [2, 3]

    model = CharCNNPallas(vocab_size, emb_dim, feature_size, kernel_sizes,
                          bias=True, seed=0)

    # Ragged batch of character-id sequences (includes a length < max kernel).
    seq_lengths = [5, 8, 3, 2]
    char_ids = []
    for Lq in seq_lengths:
        key, sub = jax.random.split(key)
        char_ids.append(jax.random.randint(sub, (Lq,), 0, vocab_size, jnp.int32))

    out = model(char_ids)
    out = jax.block_until_ready(out)

    assert out.shape == (len(seq_lengths), model.out_size), out.shape
    assert bool(jnp.all(jnp.isfinite(out)))

    ref = model.reference_forward(char_ids)
    np.testing.assert_allclose(np.asarray(out), ref, rtol=1e-3, atol=1e-3)
    print("KERNEL_OK")
</pallas_src>

<mosaic_0001>
module attributes {stable_mosaic.version = 11 : i64} {
  func.func @kernel(%arg0: i32, %arg1: memref<8x32xi32, #tpu.memory_space<vmem>>, %arg2: memref<8x1xi32, #tpu.memory_space<vmem>>, %arg3: memref<128x384xbf16, #tpu.memory_space<vmem>>, %arg4: memref<1x128xi32, #tpu.memory_space<vmem>>, %arg5: memref<1x128xf32, #tpu.memory_space<vmem>>, %arg6: memref<8x128xf32, #tpu.memory_space<vmem>>) attributes {dimension_semantics = [#tpu.dimension_semantics<parallel>], iteration_bounds = array<i64: 1>, scalar_prefetch = 0 : i64, scratch_operands = 0 : i64, tpu.core_type = #tpu.core_type<tc>, window_params = [{transform_indices = @transform_0, window_bounds = array<i64: 8, 32>}, {transform_indices = @transform_1, window_bounds = array<i64: 8, 1>}, {pipeline_mode = #tpu.pipeline_mode<synchronous>, transform_indices = @transform_2, window_bounds = array<i64: 128, 384>}, {pipeline_mode = #tpu.pipeline_mode<synchronous>, transform_indices = @transform_3, window_bounds = array<i64: 1, 128>}, {pipeline_mode = #tpu.pipeline_mode<synchronous>, transform_indices = @transform_4, window_bounds = array<i64: 1, 128>}, {transform_indices = @transform_5, window_bounds = array<i64: 8, 128>}]} {
    %c0 = arith.constant 0 : index
    %c0_0 = arith.constant 0 : index
    %0 = vector.load %arg1[%c0, %c0_0] : memref<8x32xi32, #tpu.memory_space<vmem>>, vector<8x32xi32>
    %1 = tpu.iota {dimensions = array<i32: 2>} : vector<8x32x128xi32>
    %2 = vector.shape_cast %0 : vector<8x32xi32> to vector<8x32x1xi32>
    %3 = vector.broadcast %2 : vector<8x32x1xi32> to vector<8x32x128xi32>
    %4 = arith.cmpi eq, %1, %3 : vector<8x32x128xi32>
    %5 = arith.extui %4 : vector<8x32x128xi1> to vector<8x32x128xi32>
    %6 = arith.sitofp %5 : vector<8x32x128xi32> to vector<8x32x128xf32>
    %7 = arith.truncf %6 : vector<8x32x128xf32> to vector<8x32x128xbf16>
    %8 = vector.shape_cast %7 : vector<8x32x128xbf16> to vector<256x128xbf16>
    %c0_1 = arith.constant 0 : index
    %c0_2 = arith.constant 0 : index
    %9 = vector.load %arg3[%c0_1, %c0_2] : memref<128x384xbf16, #tpu.memory_space<vmem>>, vector<128x384xbf16>
    %cst = arith.constant dense<0.000000e+00> : vector<256x384xf32>
    %10 = tpu.matmul %8, %9, %cst {dimension_numbers = #tpu.dot_dimension_numbers<[1], [0], [0], [1], [0, 0, 1, 1], [], []>} : vector<256x128xbf16>, vector<128x384xbf16>, vector<256x384xf32> -> vector<256x384xf32>
    %11 = vector.shape_cast %10 : vector<256x384xf32> to vector<8x32x384xf32>
    %12 = vector.extract_strided_slice %11 {offsets = [0, 0, 0], sizes = [8, 16, 128], strides = [1, 1, 1]} : vector<8x32x384xf32> to vector<8x16x128xf32>
    %13 = vector.extract_strided_slice %11 {offsets = [0, 1, 128], sizes = [8, 16, 128], strides = [1, 1, 1]} : vector<8x32x384xf32> to vector<8x16x128xf32>
    %14 = arith.addf %12, %13 : vector<8x16x128xf32>
    %15 = vector.extract_strided_slice %11 {offsets = [0, 2, 256], sizes = [8, 16, 128], strides = [1, 1, 1]} : vector<8x32x384xf32> to vector<8x16x128xf32>
    %16 = arith.addf %14, %15 : vector<8x16x128xf32>
    %c0_3 = arith.constant 0 : index
    %c0_4 = arith.constant 0 : index
    %17 = vector.load %arg2[%c0_3, %c0_4] : memref<8x1xi32, #tpu.memory_space<vmem>>, vector<8x1xi32>
    %c0_5 = arith.constant 0 : index
    %c0_6 = arith.constant 0 : index
    %18 = vector.load %arg4[%c0_5, %c0_6] : memref<1x128xi32, #tpu.memory_space<vmem>>, vector<1x128xi32>
    %19 = vector.broadcast %17 : vector<8x1xi32> to vector<8x128xi32>
    %20 = vector.broadcast %18 : vector<1x128xi32> to vector<8x128xi32>
    %21 = arith.subi %19, %20 : vector<8x128xi32>
    %c1_i32 = arith.constant 1 : i32
    %22 = vector.broadcast %c1_i32 : i32 to vector<8x128xi32>
    %23 = arith.addi %21, %22 : vector<8x128xi32>
    %c1_i32_7 = arith.constant 1 : i32
    %24 = vector.broadcast %c1_i32_7 : i32 to vector<8x128xi32>
    %25 = arith.maxsi %23, %24 : vector<8x128xi32>
    %26 = tpu.iota {dimensions = array<i32: 1>} : vector<8x16x128xi32>
    %27 = vector.shape_cast %25 : vector<8x128xi32> to vector<8x1x128xi32>
    %28 = vector.broadcast %27 : vector<8x1x128xi32> to vector<8x16x128xi32>
    %29 = arith.cmpi slt, %26, %28 : vector<8x16x128xi32>
    %cst_8 = arith.constant -3.000000e+38 : f32
    %30 = vector.broadcast %cst_8 : f32 to vector<8x16x128xf32>
    %31 = arith.select %29, %16, %30 : vector<8x16x128xi1>, vector<8x16x128xf32>
    %cst_9 = arith.constant dense<0xFF800000> : vector<8x128xf32>
    %32 = vector.multi_reduction <maximumf>, %31, %cst_9 [1] : vector<8x16x128xf32> to vector<8x128xf32>
    %c0_10 = arith.constant 0 : index
    %c0_11 = arith.constant 0 : index
    %33 = vector.load %arg5[%c0_10, %c0_11] : memref<1x128xf32, #tpu.memory_space<vmem>>, vector<1x128xf32>
    %34 = vector.broadcast %33 : vector<1x128xf32> to vector<8x128xf32>
    %35 = arith.addf %32, %34 : vector<8x128xf32>
    %cst_12 = arith.constant 0.000000e+00 : f32
    %36 = vector.broadcast %cst_12 : f32 to vector<8x128xf32>
    %37 = arith.maximumf %35, %36 : vector<8x128xf32>
    %c0_13 = arith.constant 0 : index
    %c0_14 = arith.constant 0 : index
    %38 = vector.load %arg6[%c0_13, %c0_14] : memref<8x128xf32, #tpu.memory_space<vmem>>, vector<8x128xf32>
    tpu.vector_store %arg6[%c0_13, %c0_14], %37 {strides = array<i32>} : memref<8x128xf32, #tpu.memory_space<vmem>>, vector<8x128xf32>,
    return
  }
  func.func @transform_0(%arg0: i32) -> (i32, i32) {
    %c0_i32 = arith.constant 0 : i32
    %c0_i32_0 = arith.constant 0 : i32
    return %arg0, %c0_i32 : i32, i32
  }
  func.func @transform_1(%arg0: i32) -> (i32, i32) {
    %c0_i32 = arith.constant 0 : i32
    %c0_i32_0 = arith.constant 0 : i32
    return %arg0, %c0_i32 : i32, i32
  }
  func.func @transform_2(%arg0: i32) -> (i32, i32) {
    %c0_i32 = arith.constant 0 : i32
    %c0_i32_0 = arith.constant 0 : i32
    %c0_i32_1 = arith.constant 0 : i32
    return %c0_i32, %c0_i32_0 : i32, i32
  }
  func.func @transform_3(%arg0: i32) -> (i32, i32) {
    %c0_i32 = arith.constant 0 : i32
    %c0_i32_0 = arith.constant 0 : i32
    %c0_i32_1 = arith.constant 0 : i32
    return %c0_i32, %c0_i32_0 : i32, i32
  }
  func.func @transform_4(%arg0: i32) -> (i32, i32) {
    %c0_i32 = arith.constant 0 : i32
    %c0_i32_0 = arith.constant 0 : i32
    %c0_i32_1 = arith.constant 0 : i32
    return %c0_i32, %c0_i32_0 : i32, i32
  }
  func.func @transform_5(%arg0: i32) -> (i32, i32) {
    %c0_i32 = arith.constant 0 : i32
    %c0_i32_0 = arith.constant 0 : i32
    return %arg0, %c0_i32 : i32, i32
  }
}

</mosaic_0001>

<llo_original>
// kernel: _charcnn_forward.1
$region0: #{_charcnn_forward.1}
  #allocation0 [shape = 'u32[]', space=smem, size = 0x4, offset = 0x4, fixed_abs, tag = 'smem constant byte address 0x4 - core index']
  #allocation1 [shape = 'u32[72,128]{1,0:T(1,128)}', space=vmem, size = 0x9000, scoped, tag = 'internal scratch']
  %s0 = inlined_call_operand.vmem [shape: s32[8,32], index: 0, kind: input, shape index: {}]
  %s1 = inlined_call_operand.vmem [shape: s32[8,1], index: 1, kind: input, shape index: {}]
  %s2 = inlined_call_operand.hbm [shape: bf16[128,384], index: 2, kind: input, shape index: {}]
  %s3 = inlined_call_operand.vmem [shape: s32[1,128], index: 3, kind: input, shape index: {}]
  %s4 = inlined_call_operand.vmem [shape: f32[1,128], index: 4, kind: input, shape index: {}]
  %s5 = inlined_call_operand.hbm [shape: f32[8,128], index: 5, kind: output, shape index: {}]
  %s6 = sld [smem:[#allocation0]]
  $region34: #{_charcnn_forward.1} parent=0
    _
  %s8 = ssub.s32 1, %s6
  %s9 = scalar_select 0, %s8, %s6
  $region1: #{_charcnn_forward.1} parent=0
    #allocation2 [shape = 'u8[98304]{0}', space=vmem, size = 0x18000, scoped, tag = 'input window, operand 2, single buffered']
    #allocation3 [shape = 's32[1]{0}', space=sflag, size = 0x4, scoped, tag = 'scoped memory for _charcnn_forward.1']
    #allocation4 [shape = 's32[1]{0}', space=sflag, size = 0x4, scoped, tag = 'scoped memory for _charcnn_forward.1']
    #allocation5 [shape = 'u8[4096]{0}', space=vmem, size = 0x1000, scoped, tag = 'output window, operand 0, single buffered']
    %10 = vsyncpa [#allocation3], 0
    %11 = vsyncpa [#allocation4], 0
    // Predicated region
    $region2: #{_charcnn_forward.1} parent=1 // pred_check
      _
    $region3: #{_charcnn_forward.1} parent=1 // pred_check_branch
      %13 = sbr.rel (0) target = $region5
    $region4: #{_charcnn_forward.1} parent=1 // pred_region
      _
    $region5: #{_charcnn_forward.1} parent=1 // pred_fallthru
      _
    // Predicated region
    $region6: #{_charcnn_forward.1} parent=1 // pred_check
      _
    $region7: #{_charcnn_forward.1} parent=1 // pred_check_branch
      %15 = sbr.rel (0) target = $region9
    $region8: #{_charcnn_forward.1} parent=1 // pred_region
      _
    $region9: #{_charcnn_forward.1} parent=1 // pred_fallthru
      _
    // Predicated region
    $region10: #{_charcnn_forward.1} parent=1 // pred_check
      _
    $region11: #{_charcnn_forward.1} parent=1 // pred_check_branch
      %17 = sbr.rel (0) target = $region13
    $region12: #{_charcnn_forward.1} parent=1 // pred_region
      %19 = vsyncadd [#allocation3], 0
      %s20 = sshll.u32 %s2, 4
      %s21 = int_to_ptr.hbm [resolvable:$true] %s20
      %s22 = sshll.u32 [#allocation2], 4
      %s23 = int_to_ptr.vmem [resolvable:$true] %s22
      %28 = dma.hbm_to_vmem [thread:$0]  %s21, 3072, %s23, [#allocation3], 192, 192, 12
    $region13: #{_charcnn_forward.1} parent=1 // pred_fallthru
      _
    // Predicated region
    $region14: #{_charcnn_forward.1} parent=1 // pred_check
      _
    $region15: #{_charcnn_forward.1} parent=1 // pred_check_branch
      %30 = sbr.rel (0) target = $region17
    $region16: #{_charcnn_forward.1} parent=1 // pred_region
      _
    $region17: #{_charcnn_forward.1} parent=1 // pred_fallthru
      _
    // Predicated region
    $region18: #{_charcnn_forward.1} parent=1 // pred_check
      _
    $region19: #{_charcnn_forward.1} parent=1 // pred_check_branch
      %32 = sbr.rel (0) target = $region21
    $region20: #{_charcnn_forward.1} parent=1 // pred_region
      _
    $region21: #{_charcnn_forward.1} parent=1 // pred_fallthru
      _
    // Predicated region
    $region22: #{_charcnn_forward.1} parent=1 // pred_check
      _
    $region23: #{_charcnn_forward.1} parent=1 // pred_check_branch
      %34 = sbr.rel (0) target = $region25
    $region24: #{_charcnn_forward.1} parent=1 // pred_region
      %36 = dma.done [#allocation3], 3072
    $region25: #{_charcnn_forward.1} parent=1 // pred_fallthru
      _
    %v37 = vld [vmem:[%s0] sm:$0xff]
    %v38 = vlaneseq
    %v39 = vand.u32 %v38, 127
    %v40 = vperm.slane %v37, 0
    %v41 = vlaneseq
    %v42 = vshrl.u32 %v41, 7
    %44 = vset.pattern.permute.xlu0 %v42
    %45 = vperm.xlu0 %44, %v40
    %v46 = vpop.permute.xlu0 %45
    %v47 = vlaneseq
    %v48 = vshrl.u32 %v47, 7
    %v49 = vadd.s32 %v48, 8
    %50 = vset.pattern.permute.xlu0 %v49
    %51 = vperm.xlu0 %50, %v40
    %v52 = vpop.permute.xlu0 %51
    %v53 = vlaneseq
    %v54 = vshrl.u32 %v53, 7
    %v55 = vadd.s32 %v54, 16
    %56 = vset.pattern.permute.xlu0 %v55
    %57 = vperm.xlu0 %56, %v40
    %v58 = vpop.permute.xlu0 %57
    %v59 = vlaneseq
    %v60 = vshrl.u32 %v59, 7
    %v61 = vadd.s32 %v60, 24
    %62 = vset.pattern.permute.xlu0 %v61
    %63 = vperm.xlu0 %62, %v40
    %v64 = vpop.permute.xlu0 %63
    %v65 = vperm.slane %v37, 1
    %v66 = vlaneseq
    %v67 = vshrl.u32 %v66, 7
    %69 = vset.pattern.permute.xlu0 %v67
    %70 = vperm.xlu0 %69, %v65
    %v71 = vpop.permute.xlu0 %70
    %v72 = vlaneseq
    %v73 = vshrl.u32 %v72, 7
    %v74 = vadd.s32 %v73, 8
    %75 = vset.pattern.permute.xlu0 %v74
    %76 = vperm.xlu0 %75, %v65
    %v77 = vpop.permute.xlu0 %76
    %v78 = vlaneseq
    %v79 = vshrl.u32 %v78, 7
    %v80 = vadd.s32 %v79, 16
    %81 = vset.pattern.permute.xlu0 %v80
    %82 = vperm.xlu0 %81, %v65
    %v83 = vpop.permute.xlu0 %82
    %v84 = vlaneseq
    %v85 = vshrl.u32 %v84, 7
    %v86 = vadd.s32 %v85, 24
    %87 = vset.pattern.permute.xlu0 %v86
    %88 = vperm.xlu0 %87, %v65
    %v89 = vpop.permute.xlu0 %88
    %v90 = vperm.slane %v37, 2
    %v91 = vlaneseq
    %v92 = vshrl.u32 %v91, 7
    %94 = vset.pattern.permute.xlu0 %v92
    %95 = vperm.xlu0 %94, %v90
    %v96 = vpop.permute.xlu0 %95
    %v97 = vlaneseq
    %v98 = vshrl.u32 %v97, 7
    %v99 = vadd.s32 %v98, 8
    %100 = vset.pattern.permute.xlu0 %v99
    %101 = vperm.xlu0 %100, %v90
    %v102 = vpop.permute.xlu0 %101
    %v103 = vlaneseq
    %v104 = vshrl.u32 %v103, 7
    %v105 = vadd.s32 %v104, 16
    %106 = vset.pattern.permute.xlu0 %v105
    %107 = vperm.xlu0 %106, %v90
    %v108 = vpop.permute.xlu0 %107
    %v109 = vlaneseq
    %v110 = vshrl.u32 %v109, 7
    %v111 = vadd.s32 %v110, 24
    %112 = vset.pattern.permute.xlu0 %v111
    %113 = vperm.xlu0 %112, %v90
    %v114 = vpop.permute.xlu0 %113
    %v115 = vperm.slane %v37, 3
    %v116 = vlaneseq
    %v117 = vshrl.u32 %v116, 7
    %119 = vset.pattern.permute.xlu0 %v117
    %120 = vperm.xlu0 %119, %v115
    %v121 = vpop.permute.xlu0 %120
    %v122 = vlaneseq
    %v123 = vshrl.u32 %v122, 7
    %v124 = vadd.s32 %v123, 8
    %125 = vset.pattern.permute.xlu0 %v124
    %126 = vperm.xlu0 %125, %v115
    %v127 = vpop.permute.xlu0 %126
    %v128 = vlaneseq
    %v129 = vshrl.u32 %v128, 7
    %v130 = vadd.s32 %v129, 16
    %131 = vset.pattern.permute.xlu0 %v130
    %132 = vperm.xlu0 %131, %v115
    %v133 = vpop.permute.xlu0 %132
    %v134 = vlaneseq
    %v135 = vshrl.u32 %v134, 7
    %v136 = vadd.s32 %v135, 24
    %137 = vset.pattern.permute.xlu0 %v136
    %138 = vperm.xlu0 %137, %v115
    %v139 = vpop.permute.xlu0 %138
    %v140 = vperm.slane %v37, 4
    %v141 = vlaneseq
    %v142 = vshrl.u32 %v141, 7
    %144 = vset.pattern.permute.xlu0 %v142
    %145 = vperm.xlu0 %144, %v140
    %v146 = vpop.permute.xlu0 %145
    %v147 = vlaneseq
    %v148 = vshrl.u32 %v147, 7
    %v149 = vadd.s32 %v148, 8
    %150 = vset.pattern.permute.xlu0 %v149
    %151 = vperm.xlu0 %150, %v140
    %v152 = vpop.permute.xlu0 %151
    %v153 = vlaneseq
    %v154 = vshrl.u32 %v153, 7
    %v155 = vadd.s32 %v154, 16
    %156 = vset.pattern.permute.xlu0 %v155
    %157 = vperm.xlu0 %156, %v140
    %v158 = vpop.permute.xlu0 %157
    %v159 = vlaneseq
    %v160 = vshrl.u32 %v159, 7
    %v161 = vadd.s32 %v160, 24
    %162 = vset.pattern.permute.xlu0 %v161
    %163 = vperm.xlu0 %162, %v140
    %v164 = vpop.permute.xlu0 %163
    %v165 = vperm.slane %v37, 5
    %v166 = vlaneseq
    %v167 = vshrl.u32 %v166, 7
    %169 = vset.pattern.permute.xlu0 %v167
    %170 = vperm.xlu0 %169, %v165
    %v171 = vpop.permute.xlu0 %170
    %v172 = vlaneseq
    %v173 = vshrl.u32 %v172, 7
    %v174 = vadd.s32 %v173, 8
    %175 = vset.pattern.permute.xlu0 %v174
    %176 = vperm.xlu0 %175, %v165
    %v177 = vpop.permute.xlu0 %176
    %v178 = vlaneseq
    %v179 = vshrl.u32 %v178, 7
    %v180 = vadd.s32 %v179, 16
    %181 = vset.pattern.permute.xlu0 %v180
    %182 = vperm.xlu0 %181, %v165
    %v183 = vpop.permute.xlu0 %182
    %v184 = vlaneseq
    %v185 = vshrl.u32 %v184, 7
    %v186 = vadd.s32 %v185, 24
    %187 = vset.pattern.permute.xlu0 %v186
    %188 = vperm.xlu0 %187, %v165
    %v189 = vpop.permute.xlu0 %188
    %v190 = vperm.slane %v37, 6
    %v191 = vlaneseq
    %v192 = vshrl.u32 %v191, 7
    %194 = vset.pattern.permute.xlu0 %v192
    %195 = vperm.xlu0 %194, %v190
    %v196 = vpop.permute.xlu0 %195
    %v197 = vlaneseq
    %v198 = vshrl.u32 %v197, 7
    %v199 = vadd.s32 %v198, 8
    %200 = vset.pattern.permute.xlu0 %v199
    %201 = vperm.xlu0 %200, %v190
    %v202 = vpop.permute.xlu0 %201
    %v203 = vlaneseq
    %v204 = vshrl.u32 %v203, 7
    %v205 = vadd.s32 %v204, 16
    %206 = vset.pattern.permute.xlu0 %v205
    %207 = vperm.xlu0 %206, %v190
    %v208 = vpop.permute.xlu0 %207
    %v209 = vlaneseq
    %v210 = vshrl.u32 %v209, 7
    %v211 = vadd.s32 %v210, 24
    %212 = vset.pattern.permute.xlu0 %v211
    %213 = vperm.xlu0 %212, %v190
    %v214 = vpop.permute.xlu0 %213
    %v215 = vperm.slane %v37, 7
    %v216 = vlaneseq
    %v217 = vshrl.u32 %v216, 7
    %219 = vset.pattern.permute.xlu0 %v217
    %220 = vperm.xlu0 %219, %v215
    %v221 = vpop.permute.xlu0 %220
    %v222 = vlaneseq
    %v223 = vshrl.u32 %v222, 7
    %v224 = vadd.s32 %v223, 8
    %225 = vset.pattern.permute.xlu0 %v224
    %226 = vperm.xlu0 %225, %v215
    %v227 = vpop.permute.xlu0 %226
    %v228 = vlaneseq
    %v229 = vshrl.u32 %v228, 7
    %v230 = vadd.s32 %v229, 16
    %231 = vset.pattern.permute.xlu0 %v230
    %232 = vperm.xlu0 %231, %v215
    %v233 = vpop.permute.xlu0 %232
    %v234 = vlaneseq
    %v235 = vshrl.u32 %v234, 7
    %v236 = vadd.s32 %v235, 24
    %237 = vset.pattern.permute.xlu0 %v236
    %238 = vperm.xlu0 %237, %v215
    %v239 = vpop.permute.xlu0 %238
    %vm240 = vcmp.eq.s32.totalorder %v39, %v46
    %vm241 = vcmp.eq.s32.totalorder %v39, %v52
    %vm242 = vcmp.eq.s32.totalorder %v39, %v58
    %vm243 = vcmp.eq.s32.totalorder %v39, %v64
    %vm244 = vcmp.eq.s32.totalorder %v39, %v71
    %vm245 = vcmp.eq.s32.totalorder %v39, %v77
    %vm246 = vcmp.eq.s32.totalorder %v39, %v83
    %vm247 = vcmp.eq.s32.totalorder %v39, %v89
    %vm248 = vcmp.eq.s32.totalorder %v39, %v96
    %vm249 = vcmp.eq.s32.totalorder %v39, %v102
    %vm250 = vcmp.eq.s32.totalorder %v39, %v108
    %vm251 = vcmp.eq.s32.totalorder %v39, %v114
    %vm252 = vcmp.eq.s32.totalorder %v39, %v121
    %vm253 = vcmp.eq.s32.totalorder %v39, %v127
    %vm254 = vcmp.eq.s32.totalorder %v39, %v133
    %vm255 = vcmp.eq.s32.totalorder %v39, %v139
    %vm256 = vcmp.eq.s32.totalorder %v39, %v146
    %vm257 = vcmp.eq.s32.totalorder %v39, %v152
    %vm258 = vcmp.eq.s32.totalorder %v39, %v158
    %vm259 = vcmp.eq.s32.totalorder %v39, %v164
    %vm260 = vcmp.eq.s32.totalorder %v39, %v171
    %vm261 = vcmp.eq.s32.totalorder %v39, %v177
    %vm262 = vcmp.eq.s32.totalorder %v39, %v183
    %vm263 = vcmp.eq.s32.totalorder %v39, %v189
    %vm264 = vcmp.eq.s32.totalorder %v39, %v196
    %vm265 = vcmp.eq.s32.totalorder %v39, %v202
    %vm266 = vcmp.eq.s32.totalorder %v39, %v208
    %vm267 = vcmp.eq.s32.totalorder %v39, %v214
    %vm268 = vcmp.eq.s32.totalorder %v39, %v221
    %vm269 = vcmp.eq.s32.totalorder %v39, %v227
    %vm270 = vcmp.eq.s32.totalorder %v39, %v233
    %vm271 = vcmp.eq.s32.totalorder %v39, %v239
    %v272 = vsel %vm240, 1, 0
    %v273 = vsel %vm241, 1, 0
    %v274 = vsel %vm242, 1, 0
    %v275 = vsel %vm243, 1, 0
    %v276 = vsel %vm244, 1, 0
    %v277 = vsel %vm245, 1, 0
    %v278 = vsel %vm246, 1, 0
    %v279 = vsel %vm247, 1, 0
    %v280 = vsel %vm248, 1, 0
    %v281 = vsel %vm249, 1, 0
    %v282 = vsel %vm250, 1, 0
    %v283 = vsel %vm251, 1, 0
    %v284 = vsel %vm252, 1, 0
    %v285 = vsel %vm253, 1, 0
    %v286 = vsel %vm254, 1, 0
    %v287 = vsel %vm255, 1, 0
    %v288 = vsel %vm256, 1, 0
    %v289 = vsel %vm257, 1, 0
    %v290 = vsel %vm258, 1, 0
    %v291 = vsel %vm259, 1, 0
    %v292 = vsel %vm260, 1, 0
    %v293 = vsel %vm261, 1, 0
    %v294 = vsel %vm262, 1, 0
    %v295 = vsel %vm263, 1, 0
    %v296 = vsel %vm264, 1, 0
    %v297 = vsel %vm265, 1, 0
    %v298 = vsel %vm266, 1, 0
    %v299 = vsel %vm267, 1, 0
    %v300 = vsel %vm268, 1, 0
    %v301 = vsel %vm269, 1, 0
    %v302 = vsel %vm270, 1, 0
    %v303 = vsel %vm271, 1, 0
    %v304 = vcvt.s32.f32 %v272
    %v305 = vcvt.s32.f32 %v273
    %v306 = vcvt.s32.f32 %v274
    %v307 = vcvt.s32.f32 %v275
    %v308 = vcvt.s32.f32 %v276
    %v309 = vcvt.s32.f32 %v277
    %v310 = vcvt.s32.f32 %v278
    %v311 = vcvt.s32.f32 %v279
    %v312 = vcvt.s32.f32 %v280
    %v313 = vcvt.s32.f32 %v281
    %v314 = vcvt.s32.f32 %v282
    %v315 = vcvt.s32.f32 %v283
    %v316 = vcvt.s32.f32 %v284
    %v317 = vcvt.s32.f32 %v285
    %v318 = vcvt.s32.f32 %v286
    %v319 = vcvt.s32.f32 %v287
    %v320 = vcvt.s32.f32 %v288
    %v321 = vcvt.s32.f32 %v289
    %v322 = vcvt.s32.f32 %v290
    %v323 = vcvt.s32.f32 %v291
    %v324 = vcvt.s32.f32 %v292
    %v325 = vcvt.s32.f32 %v293
    %v326 = vcvt.s32.f32 %v294
    %v327 = vcvt.s32.f32 %v295
    %v328 = vcvt.s32.f32 %v296
    %v329 = vcvt.s32.f32 %v297
    %v330 = vcvt.s32.f32 %v298
    %v331 = vcvt.s32.f32 %v299
    %v332 = vcvt.s32.f32 %v300
    %v333 = vcvt.s32.f32 %v301
    %v334 = vcvt.s32.f32 %v302
    %v335 = vcvt.s32.f32 %v303
    %v336 = vpack.c.bf16 %v304, %v304
    %v337 = vpack.c.bf16 %v305, %v305
    %v338 = vpack.c.bf16 %v306, %v306
    %v339 = vpack.c.bf16 %v307, %v307
    %v340 = vpack.c.bf16 %v308, %v308
    %v341 = vpack.c.bf16 %v309, %v309
    %v342 = vpack.c.bf16 %v310, %v310
    %v343 = vpack.c.bf16 %v311, %v311
    %v344 = vpack.c.bf16 %v312, %v312
    %v345 = vpack.c.bf16 %v313, %v313
    %v346 = vpack.c.bf16 %v314, %v314
    %v347 = vpack.c.bf16 %v315, %v315
    %v348 = vpack.c.bf16 %v316, %v316
    %v349 = vpack.c.bf16 %v317, %v317
    %v350 = vpack.c.bf16 %v318, %v318
    %v351 = vpack.c.bf16 %v319, %v319
    %v352 = vpack.c.bf16 %v320, %v320
    %v353 = vpack.c.bf16 %v321, %v321
    %v354 = vpack.c.bf16 %v322, %v322
    %v355 = vpack.c.bf16 %v323, %v323
    %v356 = vpack.c.bf16 %v324, %v324
    %v357 = vpack.c.bf16 %v325, %v325
    %v358 = vpack.c.bf16 %v326, %v326
    %v359 = vpack.c.bf16 %v327, %v327
    %v360 = vpack.c.bf16 %v328, %v328
    %v361 = vpack.c.bf16 %v329, %v329
    %v362 = vpack.c.bf16 %v330, %v330
    %v363 = vpack.c.bf16 %v331, %v331
    %v364 = vpack.c.bf16 %v332, %v332
    %v365 = vpack.c.bf16 %v333, %v333
    %v366 = vpack.c.bf16 %v334, %v334
    %v367 = vpack.c.bf16 %v335, %v335
    %v368 = vld [vmem:[#allocation2] sm:$0xff]
    %v369 = vld [vmem:[#allocation2 + $0x8] sm:$0xf]
    %v370 = vld [vmem:[#allocation2 + $0xc] sm:$0xff]
    %v371 = vld [vmem:[#allocation2 + $0x14] sm:$0xf]
    %v372 = vld [vmem:[#allocation2 + $0x18] sm:$0xff]
    %v373 = vld [vmem:[#allocation2 + $0x20] sm:$0xf]
    %v374 = vld [vmem:[#allocation2 + $0x24] sm:$0xff]
    %v375 = vld [vmem:[#allocation2 + $0x2c] sm:$0xf]
    %v376 = vld [vmem:[#allocation2 + $0x30] sm:$0xff]
    %v377 = vld [vmem:[#allocation2 + $0x38] sm:$0xf]
    %v378 = vld [vmem:[#allocation2 + $0x3c] sm:$0xff]
    %v379 = vld [vmem:[#allocation2 + $0x44] sm:$0xf]
    %v380 = vld [vmem:[#allocation2 + $0x48] sm:$0xff]
    %v381 = vld [vmem:[#allocation2 + $0x50] sm:$0xf]
    %v382 = vld [vmem:[#allocation2 + $0x54] sm:$0xff]
    %v383 = vld [vmem:[#allocation2 + $0x5c] sm:$0xf]
    %v384 = vld [vmem:[#allocation2 + $0x60] sm:$0xff]
    %v385 = vld [vmem:[#allocation2 + $0x68] sm:$0xf]
    %v386 = vld [vmem:[#allocation2 + $0x6c] sm:$0xff]
    %v387 = vld [vmem:[#allocation2 + $0x74] sm:$0xf]
    %v388 = vld [vmem:[#allocation2 + $0x78] sm:$0xff]
    %v389 = vld [vmem:[#allocation2 + $0x80] sm:$0xf]
    %v390 = vld [vmem:[#allocation2 + $0x84] sm:$0xff]
    %v391 = vld [vmem:[#allocation2 + $0x8c] sm:$0xf]
    %v392 = vld [vmem:[#allocation2 + $0x90] sm:$0xff]
    %v393 = vld [vmem:[#allocation2 + $0x98] sm:$0xf]
    %v394 = vld [vmem:[#allocation2 + $0x9c] sm:$0xff]
    %v395 = vld [vmem:[#allocation2 + $0xa4] sm:$0xf]
    %v396 = vld [vmem:[#allocation2 + $0xa8] sm:$0xff]
    %v397 = vld [vmem:[#allocation2 + $0xb0] sm:$0xf]
    %v398 = vld [vmem:[#allocation2 + $0xb4] sm:$0xff]
    %v399 = vld [vmem:[#allocation2 + $0xbc] sm:$0xf]
    %v432 = vunpack.c.l.b16 %v336
    %v433 = vunpack.c.l.b16 %v337
    %v434 = vunpack.c.l.b16 %v338
    %v435 = vunpack.c.l.b16 %v339
    %v436 = vunpack.c.l.b16 %v340
    %v437 = vunpack.c.l.b16 %v341
    %v438 = vunpack.c.l.b16 %v342
    %v439 = vunpack.c.l.b16 %v343
    %v440 = vunpack.c.l.b16 %v344
    %v441 = vunpack.c.l.b16 %v345
    %v442 = vunpack.c.l.b16 %v346
    %v443 = vunpack.c.l.b16 %v347
    %v444 = vunpack.c.l.b16 %v348
    %v445 = vunpack.c.l.b16 %v349
    %v446 = vunpack.c.l.b16 %v350
    %v447 = vunpack.c.l.b16 %v351
    %v448 = vunpack.c.l.b16 %v352
    %v449 = vunpack.c.l.b16 %v353
    %v450 = vunpack.c.l.b16 %v354
    %v451 = vunpack.c.l.b16 %v355
    %v452 = vunpack.c.l.b16 %v356
    %v453 = vunpack.c.l.b16 %v357
    %v454 = vunpack.c.l.b16 %v358
    %v455 = vunpack.c.l.b16 %v359
    %v456 = vunpack.c.l.b16 %v360
    %v457 = vunpack.c.l.b16 %v361
    %v458 = vunpack.c.l.b16 %v362
    %v459 = vunpack.c.l.b16 %v363
    %v460 = vunpack.c.l.b16 %v364
    %v461 = vunpack.c.l.b16 %v365
    %v462 = vunpack.c.l.b16 %v366
    %v463 = vunpack.c.l.b16 %v367
    %v464 = vpack.c.b16 %v433, %v432
    %v465 = vpack.c.b16 %v435, %v434
    %v466 = vpack.c.b16 %v437, %v436
    %v467 = vpack.c.b16 %v439, %v438
    %v468 = vpack.c.b16 %v441, %v440
    %v469 = vpack.c.b16 %v443, %v442
    %v470 = vpack.c.b16 %v445, %v444
    %v471 = vpack.c.b16 %v447, %v446
    %v472 = vpack.c.b16 %v449, %v448
    %v473 = vpack.c.b16 %v451, %v450
    %v474 = vpack.c.b16 %v453, %v452
    %v475 = vpack.c.b16 %v455, %v454
    %v476 = vpack.c.b16 %v457, %v456
    %v477 = vpack.c.b16 %v459, %v458
    %v478 = vpack.c.b16 %v461, %v460
    %v479 = vpack.c.b16 %v463, %v462
    %v528 = vunpack.c.l.b16 %v368
    %v529 = vunpack.c.h.b16 %v368
    %v530 = vunpack.c.l.b16 %v369
    %v531 = vunpack.c.l.b16 %v370
    %v532 = vunpack.c.h.b16 %v370
    %v533 = vunpack.c.l.b16 %v371
    %v534 = vunpack.c.l.b16 %v372
    %v535 = vunpack.c.h.b16 %v372
    %v536 = vunpack.c.l.b16 %v373
    %v537 = vunpack.c.l.b16 %v374
    %v538 = vunpack.c.h.b16 %v374
    %v539 = vunpack.c.l.b16 %v375
    %v540 = vunpack.c.l.b16 %v376
    %v541 = vunpack.c.h.b16 %v376
    %v542 = vunpack.c.l.b16 %v377
    %v543 = vunpack.c.l.b16 %v378
    %v544 = vunpack.c.h.b16 %v378
    %v545 = vunpack.c.l.b16 %v379
    %v546 = vunpack.c.l.b16 %v380
    %v547 = vunpack.c.h.b16 %v380
    %v548 = vunpack.c.l.b16 %v381
    %v549 = vunpack.c.l.b16 %v382
    %v550 = vunpack.c.h.b16 %v382
    %v551 = vunpack.c.l.b16 %v383
    %v552 = vunpack.c.l.b16 %v384
    %v553 = vunpack.c.h.b16 %v384
    %v554 = vunpack.c.l.b16 %v385
    %v555 = vunpack.c.l.b16 %v386
    %v556 = vunpack.c.h.b16 %v386
    %v557 = vunpack.c.l.b16 %v387
    %v558 = vunpack.c.l.b16 %v388
    %v559 = vunpack.c.h.b16 %v388
    %v560 = vunpack.c.l.b16 %v389
    %v561 = vunpack.c.l.b16 %v390
    %v562 = vunpack.c.h.b16 %v390
    %v563 = vunpack.c.l.b16 %v391
    %v564 = vunpack.c.l.b16 %v392
    %v565 = vunpack.c.h.b16 %v392
    %v566 = vunpack.c.l.b16 %v393
    %v567 = vunpack.c.l.b16 %v394
    %v568 = vunpack.c.h.b16 %v394
    %v569 = vunpack.c.l.b16 %v395
    %v570 = vunpack.c.l.b16 %v396
    %v571 = vunpack.c.h.b16 %v396
    %v572 = vunpack.c.l.b16 %v397
    %v573 = vunpack.c.l.b16 %v398
    %v574 = vunpack.c.h.b16 %v398
    %v575 = vunpack.c.l.b16 %v399
    %v576 = vpack.c.b16 %v531, %v528
    %v577 = vpack.c.b16 %v532, %v529
    %v578 = vpack.c.b16 %v533, %v530
    %v579 = vpack.c.b16 %v537, %v534
    %v580 = vpack.c.b16 %v538, %v535
    %v581 = vpack.c.b16 %v539, %v536
    %v582 = vpack.c.b16 %v543, %v540
    %v583 = vpack.c.b16 %v544, %v541
    %v584 = vpack.c.b16 %v545, %v542
    %v585 = vpack.c.b16 %v549, %v546
    %v586 = vpack.c.b16 %v550, %v547
    %v587 = vpack.c.b16 %v551, %v548
    %v588 = vpack.c.b16 %v555, %v552
    %v589 = vpack.c.b16 %v556, %v553
    %v590 = vpack.c.b16 %v557, %v554
    %v591 = vpack.c.b16 %v561, %v558
    %v592 = vpack.c.b16 %v562, %v559
    %v593 = vpack.c.b16 %v563, %v560
    %v594 = vpack.c.b16 %v567, %v564
    %v595 = vpack.c.b16 %v568, %v565
    %v596 = vpack.c.b16 %v569, %v566
    %v597 = vpack.c.b16 %v573, %v570
    %v598 = vpack.c.b16 %v574, %v571
    %v599 = vpack.c.b16 %v575, %v572
    %624 = vmatpush.bf16.msra.mxu0 %v597
    %625 = vmatpush.bf16.msra.mxu0 %v594
    %626 = vmatpush.bf16.msra.mxu0 %v591
    %627 = vmatpush.bf16.msra.mxu0 %v588
    %628 = vmatpush.bf16.msra.mxu0 %v585
    %629 = vmatpush.bf16.msra.mxu0 %v582
    %630 = vmatpush.bf16.msra.mxu0 %v579
    %631 = vmatpush.bf16.msra.mxu0 %v576
    %632 = vmatmul.bf16.gmra.mxu0 %v464
    %v633 = vpop.f32.mrf.mxu0
    %v634 = vadd.f32 0.0, %v633
    %v635 = vpop.f32.mrf.mxu0
    %v636 = vadd.f32 0.0, %v635
    %637 = vmatmul.bf16.gmra.mxu0 %v465
    %v638 = vpop.f32.mrf.mxu0
    %v639 = vpop.f32.mrf.mxu0
    %640 = vmatmul.bf16.gmra.mxu0 %v466
    %v641 = vpop.f32.mrf.mxu0
    %v642 = vadd.f32 0.0, %v641
    %v643 = vpop.f32.mrf.mxu0
    %v644 = vadd.f32 0.0, %v643
    %645 = vmatmul.bf16.gmra.mxu0 %v467
    %v646 = vpop.f32.mrf.mxu0
    %v647 = vpop.f32.mrf.mxu0
    %648 = vmatmul.bf16.gmra.mxu0 %v468
    %v649 = vpop.f32.mrf.mxu0
    %v650 = vadd.f32 0.0, %v649
    %v651 = vpop.f32.mrf.mxu0
    %v652 = vadd.f32 0.0, %v651
    %653 = vmatmul.bf16.gmra.mxu0 %v469
    %v654 = vpop.f32.mrf.mxu0
    %v655 = vpop.f32.mrf.mxu0
    %656 = vmatmul.bf16.gmra.mxu0 %v470
    %v657 = vpop.f32.mrf.mxu0
    %v658 = vadd.f32 0.0, %v657
    %v659 = vpop.f32.mrf.mxu0
    %v660 = vadd.f32 0.0, %v659
    %661 = vmatmul.bf16.gmra.mxu0 %v471
    %v662 = vpop.f32.mrf.mxu0
    %v663 = vpop.f32.mrf.mxu0
    %664 = vmatmul.bf16.gmra.mxu0 %v472
    %v665 = vpop.f32.mrf.mxu0
    %v666 = vadd.f32 0.0, %v665
    %v667 = vpop.f32.mrf.mxu0
    %v668 = vadd.f32 0.0, %v667
    %669 = vmatmul.bf16.gmra.mxu0 %v473
    %v670 = vpop.f32.mrf.mxu0
    %v671 = vpop.f32.mrf.mxu0
    %672 = vmatmul.bf16.gmra.mxu0 %v474
    %v673 = vpop.f32.mrf.mxu0
    %v674 = vadd.f32 0.0, %v673
    %v675 = vpop.f32.mrf.mxu0
    %v676 = vadd.f32 0.0, %v675
    %677 = vmatmul.bf16.gmra.mxu0 %v475
    %v678 = vpop.f32.mrf.mxu0
    %v679 = vpop.f32.mrf.mxu0
    %680 = vmatmul.bf16.gmra.mxu0 %v476
    %v681 = vpop.f32.mrf.mxu0
    %v682 = vadd.f32 0.0, %v681
    %v683 = vpop.f32.mrf.mxu0
    %v684 = vadd.f32 0.0, %v683
    %685 = vmatmul.bf16.gmra.mxu0 %v477
    %v686 = vpop.f32.mrf.mxu0
    %v687 = vpop.f32.mrf.mxu0
    %688 = vmatmul.bf16.gmra.mxu0 %v478
    %v689 = vpop.f32.mrf.mxu0
    %v690 = vadd.f32 0.0, %v689
    %v691 = vpop.f32.mrf.mxu0
    %v692 = vadd.f32 0.0, %v691
    %693 = vmatmul.bf16.gmra.mxu0 %v479
    %v694 = vpop.f32.mrf.mxu0
    %v695 = vpop.f32.mrf.mxu0
    %696 = vdwg.mxu0
    %697 = vmatpush.bf16.msra.mxu0 %v598
    %698 = vmatpush.bf16.msra.mxu0 %v595
    %699 = vmatpush.bf16.msra.mxu0 %v592
    %700 = vmatpush.bf16.msra.mxu0 %v589
    %701 = vmatpush.bf16.msra.mxu0 %v586
    %702 = vmatpush.bf16.msra.mxu0 %v583
    %703 = vmatpush.bf16.msra.mxu0 %v580
    %704 = vmatpush.bf16.msra.mxu0 %v577
    %705 = vmatmul.bf16.gmra.mxu0 %v464
    %v706 = vpop.f32.mrf.mxu0
    %v707 = vadd.f32 0.0, %v706
    %v708 = vpop.f32.mrf.mxu0
    %v709 = vadd.f32 0.0, %v708
    %710 = vmatmul.bf16.gmra.mxu0 %v465
    %v711 = vpop.f32.mrf.mxu0
    %v712 = vadd.f32 0.0, %v711
    %v713 = vpop.f32.mrf.mxu0
    %714 = vmatmul.bf16.gmra.mxu0 %v466
    %v715 = vpop.f32.mrf.mxu0
    %v716 = vadd.f32 0.0, %v715
    %v717 = vpop.f32.mrf.mxu0
    %v718 = vadd.f32 0.0, %v717
    %719 = vmatmul.bf16.gmra.mxu0 %v467
    %v720 = vpop.f32.mrf.mxu0
    %v721 = vadd.f32 0.0, %v720
    %v722 = vpop.f32.mrf.mxu0
    %723 = vmatmul.bf16.gmra.mxu0 %v468
    %v724 = vpop.f32.mrf.mxu0
    %v725 = vadd.f32 0.0, %v724
    %v726 = vpop.f32.mrf.mxu0
    %v727 = vadd.f32 0.0, %v726
    %728 = vmatmul.bf16.gmra.mxu0 %v469
    %v729 = vpop.f32.mrf.mxu0
    %v730 = vadd.f32 0.0, %v729
    %v731 = vpop.f32.mrf.mxu0
    %732 = vmatmul.bf16.gmra.mxu0 %v470
    %v733 = vpop.f32.mrf.mxu0
    %v734 = vadd.f32 0.0, %v733
    %v735 = vpop.f32.mrf.mxu0
    %v736 = vadd.f32 0.0, %v735
    %737 = vmatmul.bf16.gmra.mxu0 %v471
    %v738 = vpop.f32.mrf.mxu0
    %v739 = vadd.f32 0.0, %v738
    %v740 = vpop.f32.mrf.mxu0
    %741 = vmatmul.bf16.gmra.mxu0 %v472
    %v742 = vpop.f32.mrf.mxu0
    %v743 = vadd.f32 0.0, %v742
    %v744 = vpop.f32.mrf.mxu0
    %v745 = vadd.f32 0.0, %v744
    %746 = vmatmul.bf16.gmra.mxu0 %v473
    %v747 = vpop.f32.mrf.mxu0
    %v748 = vadd.f32 0.0, %v747
    %v749 = vpop.f32.mrf.mxu0
    %750 = vmatmul.bf16.gmra.mxu0 %v474
    %v751 = vpop.f32.mrf.mxu0
    %v752 = vadd.f32 0.0, %v751
    %v753 = vpop.f32.mrf.mxu0
    %v754 = vadd.f32 0.0, %v753
    %755 = vmatmul.bf16.gmra.mxu0 %v475
    %v756 = vpop.f32.mrf.mxu0
    %v757 = vadd.f32 0.0, %v756
    %v758 = vpop.f32.mrf.mxu0
    %759 = vmatmul.bf16.gmra.mxu0 %v476
    %v760 = vpop.f32.mrf.mxu0
    %v761 = vadd.f32 0.0, %v760
    %v762 = vpop.f32.mrf.mxu0
    %v763 = vadd.f32 0.0, %v762
    %764 = vmatmul.bf16.gmra.mxu0 %v477
    %v765 = vpop.f32.mrf.mxu0
    %v766 = vadd.f32 0.0, %v765
    %v767 = vpop.f32.mrf.mxu0
    %768 = vmatmul.bf16.gmra.mxu0 %v478
    %v769 = vpop.f32.mrf.mxu0
    %v770 = vadd.f32 0.0, %v769
    %v771 = vpop.f32.mrf.mxu0
    %v772 = vadd.f32 0.0, %v771
    %773 = vmatmul.bf16.gmra.mxu0 %v479
    %v774 = vpop.f32.mrf.mxu0
    %v775 = vadd.f32 0.0, %v774
    %v776 = vpop.f32.mrf.mxu0
    %777 = vdwg.mxu0
    %778 = vmatpush.bf16.msra.mxu0 %v599
    %779 = vmatpush.bf16.msra.mxu0 %v596
    %780 = vmatpush.bf16.msra.mxu0 %v593
    %781 = vmatpush.bf16.msra.mxu0 %v590
    %782 = vmatpush.bf16.msra.mxu0 %v587
    %783 = vmatpush.bf16.msra.mxu0 %v584
    %784 = vmatpush.bf16.msra.mxu0 %v581
    %785 = vmatpush.bf16.msra.mxu0 %v578
    %786 = vmatmul.bf16.gmra.mxu0 %v464
    %v787 = vpop.f32.mrf.mxu0
    %v788 = vadd.f32 0.0, %v787
    %v789 = vpop.f32.mrf.mxu0
    %v790 = vadd.f32 0.0, %v789
    %791 = vmatmul.bf16.gmra.mxu0 %v465
    %v792 = vpop.f32.mrf.mxu0
    %v793 = vadd.f32 0.0, %v792
    %v794 = vpop.f32.mrf.mxu0
    %795 = vmatmul.bf16.gmra.mxu0 %v466
    %v796 = vpop.f32.mrf.mxu0
    %v797 = vadd.f32 0.0, %v796
    %v798 = vpop.f32.mrf.mxu0
    %v799 = vadd.f32 0.0, %v798
    %800 = vmatmul.bf16.gmra.mxu0 %v467
    %v801 = vpop.f32.mrf.mxu0
    %v802 = vadd.f32 0.0, %v801
    %v803 = vpop.f32.mrf.mxu0
    %804 = vmatmul.bf16.gmra.mxu0 %v468
    %v805 = vpop.f32.mrf.mxu0
    %v806 = vadd.f32 0.0, %v805
    %v807 = vpop.f32.mrf.mxu0
    %v808 = vadd.f32 0.0, %v807
    %809 = vmatmul.bf16.gmra.mxu0 %v469
    %v810 = vpop.f32.mrf.mxu0
    %v811 = vadd.f32 0.0, %v810
    %v812 = vpop.f32.mrf.mxu0
    %813 = vmatmul.bf16.gmra.mxu0 %v470
    %v814 = vpop.f32.mrf.mxu0
    %v815 = vadd.f32 0.0, %v814
    %v816 = vpop.f32.mrf.mxu0
    %v817 = vadd.f32 0.0, %v816
    %818 = vmatmul.bf16.gmra.mxu0 %v471
    %v819 = vpop.f32.mrf.mxu0
    %v820 = vadd.f32 0.0, %v819
    %v821 = vpop.f32.mrf.mxu0
    %822 = vmatmul.bf16.gmra.mxu0 %v472
    %v823 = vpop.f32.mrf.mxu0
    %v824 = vadd.f32 0.0, %v823
    %v825 = vpop.f32.mrf.mxu0
    %v826 = vadd.f32 0.0, %v825
    %827 = vmatmul.bf16.gmra.mxu0 %v473
    %v828 = vpop.f32.mrf.mxu0
    %v829 = vadd.f32 0.0, %v828
    %v830 = vpop.f32.mrf.mxu0
    %831 = vmatmul.bf16.gmra.mxu0 %v474
    %v832 = vpop.f32.mrf.mxu0
    %v833 = vadd.f32 0.0, %v832
    %v834 = vpop.f32.mrf.mxu0
    %v835 = vadd.f32 0.0, %v834
    %836 = vmatmul.bf16.gmra.mxu0 %v475
    %v837 = vpop.f32.mrf.mxu0
    %v838 = vadd.f32 0.0, %v837
    %v839 = vpop.f32.mrf.mxu0
    %840 = vmatmul.bf16.gmra.mxu0 %v476
    %v841 = vpop.f32.mrf.mxu0
    %v842 = vadd.f32 0.0, %v841
    %v843 = vpop.f32.mrf.mxu0
    %v844 = vadd.f32 0.0, %v843
    %845 = vmatmul.bf16.gmra.mxu0 %v477
    %v846 = vpop.f32.mrf.mxu0
    %v847 = vadd.f32 0.0, %v846
    %v848 = vpop.f32.mrf.mxu0
    %849 = vmatmul.bf16.gmra.mxu0 %v478
    %v850 = vpop.f32.mrf.mxu0
    %v851 = vadd.f32 0.0, %v850
    %v852 = vpop.f32.mrf.mxu0
    %v853 = vadd.f32 0.0, %v852
    %854 = vmatmul.bf16.gmra.mxu0 %v479
    %v855 = vpop.f32.mrf.mxu0
    %v856 = vadd.f32 0.0, %v855
    %v857 = vpop.f32.mrf.mxu0
    %858 = vdwg.mxu0
    %vm883 = vcmask 1046528
    %v884 = vrot.slane %v707, 1
    %v885 = vrot.slane %v709, 1
    %v886 = vsel %vm883, %v884, %v885
    %v887 = vrot.slane %v712, 1
    %v888 = vsel %vm883, %v885, %v887
    %v889 = vrot.slane %v716, 1
    %v890 = vrot.slane %v718, 1
    %v891 = vsel %vm883, %v889, %v890
    %v892 = vrot.slane %v721, 1
    %v893 = vsel %vm883, %v890, %v892
    %v894 = vrot.slane %v725, 1
    %v895 = vrot.slane %v727, 1
    %v896 = vsel %vm883, %v894, %v895
    %v897 = vrot.slane %v730, 1
    %v898 = vsel %vm883, %v895, %v897
    %v899 = vrot.slane %v734, 1
    %v900 = vrot.slane %v736, 1
    %v901 = vsel %vm883, %v899, %v900
    %v902 = vrot.slane %v739, 1
    %v903 = vsel %vm883, %v900, %v902
    %v904 = vrot.slane %v743, 1
    %v905 = vrot.slane %v745, 1
    %v906 = vsel %vm883, %v904, %v905
    %v907 = vrot.slane %v748, 1
    %v908 = vsel %vm883, %v905, %v907
    %v909 = vrot.slane %v752, 1
    %v910 = vrot.slane %v754, 1
    %v911 = vsel %vm883, %v909, %v910
    %v912 = vrot.slane %v757, 1
    %v913 = vsel %vm883, %v910, %v912
    %v914 = vrot.slane %v761, 1
    %v915 = vrot.slane %v763, 1
    %v916 = vsel %vm883, %v914, %v915
    %v917 = vrot.slane %v766, 1
    %v918 = vsel %vm883, %v915, %v917
    %v919 = vrot.slane %v770, 1
    %v920 = vrot.slane %v772, 1
    %v921 = vsel %vm883, %v919, %v920
    %v922 = vrot.slane %v775, 1
    %v923 = vsel %vm883, %v920, %v922
    %v940 = vadd.f32 %v634, %v886
    %v941 = vadd.f32 %v636, %v888
    %v942 = vadd.f32 %v642, %v891
    %v943 = vadd.f32 %v644, %v893
    %v944 = vadd.f32 %v650, %v896
    %v945 = vadd.f32 %v652, %v898
    %v946 = vadd.f32 %v658, %v901
    %v947 = vadd.f32 %v660, %v903
    %v948 = vadd.f32 %v666, %v906
    %v949 = vadd.f32 %v668, %v908
    %v950 = vadd.f32 %v674, %v911
    %v951 = vadd.f32 %v676, %v913
    %v952 = vadd.f32 %v682, %v916
    %v953 = vadd.f32 %v684, %v918
    %v954 = vadd.f32 %v690, %v921
    %v955 = vadd.f32 %v692, %v923
    %vm980 = vcmask 1045504
    %v981 = vrot.slane %v788, 2
    %v982 = vrot.slane %v790, 2
    %v983 = vsel %vm980, %v981, %v982
    %v984 = vrot.slane %v793, 2
    %v985 = vsel %vm980, %v982, %v984
    %v986 = vrot.slane %v797, 2
    %v987 = vrot.slane %v799, 2
    %v988 = vsel %vm980, %v986, %v987
    %v989 = vrot.slane %v802, 2
    %v990 = vsel %vm980, %v987, %v989
    %v991 = vrot.slane %v806, 2
    %v992 = vrot.slane %v808, 2
    %v993 = vsel %vm980, %v991, %v992
    %v994 = vrot.slane %v811, 2
    %v995 = vsel %vm980, %v992, %v994
    %v996 = vrot.slane %v815, 2
    %v997 = vrot.slane %v817, 2
    %v998 = vsel %vm980, %v996, %v997
    %v999 = vrot.slane %v820, 2
    %v1000 = vsel %vm980, %v997, %v999
    %v1001 = vrot.slane %v824, 2
    %v1002 = vrot.slane %v826, 2
    %v1003 = vsel %vm980, %v1001, %v1002
    %v1004 = vrot.slane %v829, 2
    %v1005 = vsel %vm980, %v1002, %v1004
    %v1006 = vrot.slane %v833, 2
    %v1007 = vrot.slane %v835, 2
    %v1008 = vsel %vm980, %v1006, %v1007
    %v1009 = vrot.slane %v838, 2
    %v1010 = vsel %vm980, %v1007, %v1009
    %v1011 = vrot.slane %v842, 2
    %v1012 = vrot.slane %v844, 2
    %v1013 = vsel %vm980, %v1011, %v1012
    %v1014 = vrot.slane %v847, 2
    %v1015 = vsel %vm980, %v1012, %v1014
    %v1016 = vrot.slane %v851, 2
    %v1017 = vrot.slane %v853, 2
    %v1018 = vsel %vm980, %v1016, %v1017
    %v1019 = vrot.slane %v856, 2
    %v1020 = vsel %vm980, %v1017, %v1019
    %v1037 = vadd.f32 %v940, %v983
    %v1038 = vadd.f32 %v941, %v985
    %v1039 = vadd.f32 %v942, %v988
    %v1040 = vadd.f32 %v943, %v990
    %v1041 = vadd.f32 %v944, %v993
    %v1042 = vadd.f32 %v945, %v995
    %v1043 = vadd.f32 %v946, %v998
    %v1044 = vadd.f32 %v947, %v1000
    %v1045 = vadd.f32 %v948, %v1003
    %v1046 = vadd.f32 %v949, %v1005
    %v1047 = vadd.f32 %v950, %v1008
    %v1048 = vadd.f32 %v951, %v1010
    %v1049 = vadd.f32 %v952, %v1013
    %v1050 = vadd.f32 %v953, %v1015
    %v1051 = vadd.f32 %v954, %v1018
    %v1052 = vadd.f32 %v955, %v1020
    %v1053 = vld [vmem:[%s1] sm:$0xff]
    %v1054 = vld [vmem:[%s3] sm:$0x1]
    %1055 = vset.pattern.permute.xlu0 0
    %1056 = vperm.xlu0 %1055, %v1053
    %v1057 = vpop.permute.xlu0 %1056
    %v1058 = vperm.slane %v1054, 0
    %v1059 = vsub.s32 %v1057, %v1058
    %v1060 = vadd.s32 %v1059, 1
    %vm1061 = vcmp.gt.s32.totalorder %v1060, 1
    %v1062 = vsel %vm1061, %v1060, 1
    %v1063 = vlaneseq
    %v1064 = vshrl.u32 %v1063, 7
    %v1065 = vadd.s32 %v1064, 8
    %v1066 = vrot.slane %v1062, 1
    %v1067 = vrot.slane %v1062, 2
    %v1068 = vrot.slane %v1062, 3
    %v1069 = vrot.slane %v1062, 4
    %v1070 = vrot.slane %v1062, 5
    %v1071 = vrot.slane %v1062, 6
    %v1072 = vrot.slane %v1062, 7
    %v1073 = vperm.slane %v1062, 0
    %v1074 = vperm.slane %v1066, 0
    %v1075 = vperm.slane %v1067, 0
    %v1076 = vperm.slane %v1068, 0
    %v1077 = vperm.slane %v1069, 0
    %v1078 = vperm.slane %v1070, 0
    %v1079 = vperm.slane %v1071, 0
    %v1080 = vperm.slane %v1072, 0
    %vm1081 = vcmp.lt.s32.totalorder %v1064, %v1073
    %vm1082 = vcmp.lt.s32.totalorder %v1065, %v1073
    %vm1083 = vcmp.lt.s32.totalorder %v1064, %v1074
    %vm1084 = vcmp.lt.s32.totalorder %v1065, %v1074
    %vm1085 = vcmp.lt.s32.totalorder %v1064, %v1075
    %vm1086 = vcmp.lt.s32.totalorder %v1065, %v1075
    %vm1087 = vcmp.lt.s32.totalorder %v1064, %v1076
    %vm1088 = vcmp.lt.s32.totalorder %v1065, %v1076
    %vm1089 = vcmp.lt.s32.totalorder %v1064, %v1077
    %vm1090 = vcmp.lt.s32.totalorder %v1065, %v1077
    %vm1091 = vcmp.lt.s32.totalorder %v1064, %v1078
    %vm1092 = vcmp.lt.s32.totalorder %v1065, %v1078
    %vm1093 = vcmp.lt.s32.totalorder %v1064, %v1079
    %vm1094 = vcmp.lt.s32.totalorder %v1065, %v1079
    %vm1095 = vcmp.lt.s32.totalorder %v1064, %v1080
    %vm1096 = vcmp.lt.s32.totalorder %v1065, %v1080
    %v1097 = vsel %vm1081, %v1037, -3e+38
    %v1098 = vsel %vm1082, %v1038, -3e+38
    %v1099 = vsel %vm1083, %v1039, -3e+38
    %v1100 = vsel %vm1084, %v1040, -3e+38
    %v1101 = vsel %vm1085, %v1041, -3e+38
    %v1102 = vsel %vm1086, %v1042, -3e+38
    %v1103 = vsel %vm1087, %v1043, -3e+38
    %v1104 = vsel %vm1088, %v1044, -3e+38
    %v1105 = vsel %vm1089, %v1045, -3e+38
    %v1106 = vsel %vm1090, %v1046, -3e+38
    %v1107 = vsel %vm1091, %v1047, -3e+38
    %v1108 = vsel %vm1092, %v1048, -3e+38
    %v1109 = vsel %vm1093, %v1049, -3e+38
    %v1110 = vsel %vm1094, %v1050, -3e+38
    %v1111 = vsel %vm1095, %v1051, -3e+38
    %v1112 = vsel %vm1096, %v1052, -3e+38
    %v1113 = vmax.f32 %v1097, %v1098
    %v1114 = vrot.slane %v1113, 4
    %v1115 = vmax.f32 %v1113, %v1114
    %v1116 = vrot.slane %v1115, 2
    %v1117 = vmax.f32 %v1115, %v1116
    %v1118 = vrot.slane %v1117, 1
    %v1119 = vmax.f32 %v1117, %v1118
    %v1120 = vmax.f32 %v1099, %v1100
    %v1121 = vrot.slane %v1120, 4
    %v1122 = vmax.f32 %v1120, %v1121
    %v1123 = vrot.slane %v1122, 2
    %v1124 = vmax.f32 %v1122, %v1123
    %v1125 = vrot.slane %v1124, 1
    %v1126 = vmax.f32 %v1124, %v1125
    %v1127 = vmax.f32 %v1101, %v1102
    %v1128 = vrot.slane %v1127, 4
    %v1129 = vmax.f32 %v1127, %v1128
    %v1130 = vrot.slane %v1129, 2
    %v1131 = vmax.f32 %v1129, %v1130
    %v1132 = vrot.slane %v1131, 1
    %v1133 = vmax.f32 %v1131, %v1132
    %v1134 = vmax.f32 %v1103, %v1104
    %v1135 = vrot.slane %v1134, 4
    %v1136 = vmax.f32 %v1134, %v1135
    %v1137 = vrot.slane %v1136, 2
    %v1138 = vmax.f32 %v1136, %v1137
    %v1139 = vrot.slane %v1138, 1
    %v1140 = vmax.f32 %v1138, %v1139
    %v1141 = vmax.f32 %v1105, %v1106
    %v1142 = vrot.slane %v1141, 4
    %v1143 = vmax.f32 %v1141, %v1142
    %v1144 = vrot.slane %v1143, 2
    %v1145 = vmax.f32 %v1143, %v1144
    %v1146 = vrot.slane %v1145, 1
    %v1147 = vmax.f32 %v1145, %v1146
    %v1148 = vmax.f32 %v1107, %v1108
    %v1149 = vrot.slane %v1148, 4
    %v1150 = vmax.f32 %v1148, %v1149
    %v1151 = vrot.slane %v1150, 2
    %v1152 = vmax.f32 %v1150, %v1151
    %v1153 = vrot.slane %v1152, 1
    %v1154 = vmax.f32 %v1152, %v1153
    %v1155 = vmax.f32 %v1109, %v1110
    %v1156 = vrot.slane %v1155, 4
    %v1157 = vmax.f32 %v1155, %v1156
    %v1158 = vrot.slane %v1157, 2
    %v1159 = vmax.f32 %v1157, %v1158
    %v1160 = vrot.slane %v1159, 1
    %v1161 = vmax.f32 %v1159, %v1160
    %v1162 = vmax.f32 %v1111, %v1112
    %v1163 = vrot.slane %v1162, 4
    %v1164 = vmax.f32 %v1162, %v1163
    %v1165 = vrot.slane %v1164, 2
    %v1166 = vmax.f32 %v1164, %v1165
    %v1167 = vrot.slane %v1166, 1
    %v1168 = vmax.f32 %v1166, %v1167
    %v1169 = vld [vmem:[%s4] sm:$0x1]
    %v1171 = vperm.slane %v1169, 0
    %v1173 = vadd.f32 %v1119, %v1171
    %v1174 = vadd.f32 %v1126, %v1171
    %v1175 = vadd.f32 %v1133, %v1171
    %v1176 = vadd.f32 %v1140, %v1171
    %v1177 = vadd.f32 %v1147, %v1171
    %v1178 = vadd.f32 %v1154, %v1171
    %v1179 = vadd.f32 %v1161, %v1171
    %v1180 = vadd.f32 %v1168, %v1171
    %v1181 = vmax.f32 %v1173, 0.0
    %v1182 = vmax.f32 %v1174, 0.0
    %v1183 = vmax.f32 %v1175, 0.0
    %v1184 = vmax.f32 %v1176, 0.0
    %v1185 = vmax.f32 %v1177, 0.0
    %v1186 = vmax.f32 %v1178, 0.0
    %v1187 = vmax.f32 %v1179, 0.0
    %v1188 = vmax.f32 %v1180, 0.0
    %v1197 = vrot.slane %v1182, 7
    %vm1198 = vcmask 1041409
    %v1199 = vsel %vm1198, %v1197, %v1181
    %v1200 = vrot.slane %v1183, 6
    %vm1201 = vcmask 1042434
    %v1202 = vsel %vm1201, %v1200, %v1199
    %v1203 = vrot.slane %v1184, 5
    %vm1204 = vcmask 1043459
    %v1205 = vsel %vm1204, %v1203, %v1202
    %v1206 = vrot.slane %v1185, 4
    %vm1207 = vcmask 1044484
    %v1208 = vsel %vm1207, %v1206, %v1205
    %v1209 = vrot.slane %v1186, 3
    %vm1210 = vcmask 1045509
    %v1211 = vsel %vm1210, %v1209, %v1208
    %v1212 = vrot.slane %v1187, 2
    %vm1213 = vcmask 1046534
    %v1214 = vsel %vm1213, %v1212, %v1211
    %v1215 = vrot.slane %v1188, 1
    %vm1216 = vcmask 1047559
    %v1217 = vsel %vm1216, %v1215, %v1214
    %1219 = vst [vmem:[#allocation5] sm:$0xff] %v1217
    // Predicated region
    $region26: #{_charcnn_forward.1} parent=1 // pred_check
      _
    $region27: #{_charcnn_forward.1} parent=1 // pred_check_branch
      %1221 = sbr.rel (0) target = $region29
    $region28: #{_charcnn_forward.1} parent=1 // pred_region
      %1223 = vsyncadd [#allocation4], 0
      %s1225 = sshll.u32 [#allocation5], 4
      %s1226 = int_to_ptr.vmem [resolvable:$true] %s1225
      %s1227 = sshll.u32 %s5, 4
      %s1228 = int_to_ptr.hbm [resolvable:$true] %s1227
      %1230 = dma.vmem_to_hbm [thread:$0]  %s1226, 128, %s1228, [#allocation4]
    $region29: #{_charcnn_forward.1} parent=1 // pred_fallthru
      _
    // Predicated region
    $region30: #{_charcnn_forward.1} parent=1 // pred_check
      _
    $region31: #{_charcnn_forward.1} parent=1 // pred_check_branch
      %1232 = sbr.rel (0) target = $region33
    $region32: #{_charcnn_forward.1} parent=1 // pred_region
      %1234 = dma.done [#allocation4], 128
    $region33: #{_charcnn_forward.1} parent=1 // pred_fallthru
      _
    %1235 = vsyncpa [#allocation3], 1
    %1236 = vsyncpa [#allocation4], 1

</llo_original>
